<compile_context>
chip_gen: v7x
topology: tpu7x:2x2x1
jax: 0.10.0
libtpu: 0.0.40
codegen_flags: <defaults>
</compile_context>

<pallas_src>
import math

import jax
import jax.numpy as jnp
from jax.experimental import pallas as pl
from jax.experimental.pallas import tpu as pltpu


# ---------------------------------------------------------------------------
# Kernels
# ---------------------------------------------------------------------------
def stats_kernel(p_ref, w_ref, sum_ref, sq_ref):
    """Per-tile partial BN statistics of the conv output.

    p_ref  : (NW, TG, K)   bf16  im2col patches (NW = pool_h*pool_w taps)
    w_ref  : (K, CP)       bf16  conv weights, channels zero-padded to CP
    sum_ref, sq_ref : (1, 1, CP) f32  per-tile partial sum / sum-of-squares
    """
    nw, tg, k = p_ref.shape
    cp = w_ref.shape[1]
    p = p_ref[...].reshape(nw * tg, k)
    # conv as an im2col GEMM: bf16 inputs, f32 accumulation on the MXU.
    y = jnp.dot(p, w_ref[...], preferred_element_type=jnp.float32)  # (NW*TG, CP)
    # Zero-padded rows contribute 0 to both accumulators -> stats stay exact.
    sum_ref[...] = jnp.sum(y, axis=0, keepdims=True).reshape(1, 1, cp)
    sq_ref[...] = jnp.sum(y * y, axis=0, keepdims=True).reshape(1, 1, cp)
    # TODO(synk): if this pass ever turns VALU-bound at large tiles, switch the
    # sumsq to the Gram-matrix (P^T P) MXU formulation per the perf review.


def epilogue_kernel(p_ref, w_ref, scale_ref, shift_ref, o_ref):
    """Conv GEMM recompute + folded-BN affine + 2x4 max-pool + ELU.

    p_ref  : (NW, TG, K)  bf16
    w_ref  : (K, CP)      bf16
    scale_ref, shift_ref : (1, CP) f32  folded BN scale / shift
    o_ref  : (TG, CP)     f32  pooled output tile (lane-dense)
    """
    nw, tg, k = p_ref.shape
    cp = w_ref.shape[1]
    p = p_ref[...].reshape(nw * tg, k)
    y = jnp.dot(p, w_ref[...], preferred_element_type=jnp.float32)  # (NW*TG, CP)
    # BN folded to one scale/shift FMA (conv bias cancelled by batch mean).
    z = y * scale_ref[...] + shift_ref[...]
    # MaxPool2d((2,4)) first: pool taps are the leading axis -> pure VPU max of
    # NW aligned slabs, no cross-lane movement.
    pooled = jnp.max(z.reshape(nw, tg, cp), axis=0)                  # (TG, CP)
    # ELU(alpha=1) applied AFTER the pool (monotonic => commutes with max):
    # 8x fewer exps.  exp(min(.,0))-1 is the known-safe lowering path.
    o_ref[...] = jnp.where(pooled > 0, pooled,
                           jnp.exp(jnp.minimum(pooled, 0.0)) - 1.0)


# ---------------------------------------------------------------------------
# Wrapper
# ---------------------------------------------------------------------------
def _round_up(v, m):
    return ((v + m - 1) // m) * m


def _vmem_capacity_bytes():
    try:
        info = pltpu.get_tpu_info()
        cap = int(getattr(info, "vmem_capacity_bytes", 0))
        if cap > 0:
            return cap
    except Exception:
        pass
    return 64 * 1024 * 1024  # conservative: v7x per-TensorCore VMEM


def _tile_budget():
    """(row_tile cap, vmem_limit_bytes) per TPU generation.

    ~13 KB VMEM per row worst case (lane-padded patch double-buffer + f32
    y/z intermediates + output): 4096 rows ~ 54 MiB (fits 128-MiB parts),
    2048 rows ~ 27 MiB (fits v7x's 64 MiB).
    """
    if _vmem_capacity_bytes() >= 128 * 1024 * 1024:   # v5e / v6e
        return 4096, 96 * 1024 * 1024
    return 2048, 48 * 1024 * 1024                     # v7x / unknown


def conv_block_forward(x, w, b, gamma, beta, *, pool=(2, 4), eps=1e-5,
                       row_tile=None):
    """x: (N, Cin, H, W) NCHW; w: (Cout, Cin, KH, KW).  Returns (N, Cout, OH, OW).

    `b` (conv bias) is accepted for API parity but unused: with training-mode
    BatchNorm the bias is exactly cancelled by the batch-mean subtraction.
    """
    del b
    n, cin, h, wdt = x.shape
    cout, _, kh, kw = w.shape
    ph, pw = pool
    if h % ph or wdt % pw:
        # TODO(synk): non-divisible spatial dims need BN stats over the full
        # (uncropped) conv output; only the divisible case is implemented.
        raise NotImplementedError("H and W must be divisible by the pool size")
    oh, ow = h // ph, wdt // pw
    pad = 1
    k_dim = kh * kw * cin
    nw = ph * pw
    g = n * oh * ow
    cp = _round_up(cout, 128)                 # lane-dense channel padding

    # ---- im2col glue (bf16), built DIRECTLY in (PH,PW, N,OH,OW, K) order via
    # strided slices: one materialization, no 6-D transpose round trip.  K on
    # the lane axis keeps the GEMM LHS lane-dense even for tiny Cin. ----
    xh = jnp.transpose(x, (0, 2, 3, 1)).astype(jnp.bfloat16)          # NHWC
    xp = jnp.pad(xh, ((0, 0), (pad, pad), (pad, pad), (0, 0)))
    pool_rows = []
    for pi in range(ph):
        for pj in range(pw):
            conv_taps = [
                xp[:, pi + ih: pi + ih + h: ph, pj + iw: pj + iw + wdt: pw, :]
                for ih in range(kh) for iw in range(kw)
            ]
            pool_rows.append(
                jnp.concatenate(conv_taps, axis=-1).reshape(1, g, k_dim))
    patches = jnp.concatenate(pool_rows, axis=0)                      # (NW, G, K)

    wm = jnp.transpose(w, (2, 3, 1, 0)).reshape(k_dim, cout)
    wm = jnp.pad(wm, ((0, 0), (0, cp - cout))).astype(jnp.bfloat16)   # (K, CP)

    # ---- row tiling: pad-and-mask (no divisibility requirement) ----
    cap, vmem_limit = _tile_budget()
    t = cap if row_tile is None else int(row_tile)
    t = min(t, _round_up(g, 8))
    t = max(8, _round_up(t, 8))               # sublane alignment
    gp = _round_up(g, t)
    if gp != g:
        patches = jnp.pad(patches, ((0, 0), (0, gp - g), (0, 0)))
    num_tiles = gp // t

    common_in_specs = [
        pl.BlockSpec((nw, t, k_dim), lambda i: (0, i, 0)),
        pl.BlockSpec((k_dim, cp), lambda i: (0, 0)),
    ]
    cparams = pltpu.CompilerParams(
        dimension_semantics=("parallel",),    # tile axis splits across v7x TCs
        vmem_limit_bytes=vmem_limit)

    # ---- pass 1: per-tile partial BN statistics (tiny outputs, no big HBM
    # writeback), reduced in XLA. ----
    psum, psq = pl.pallas_call(
        stats_kernel,
        out_shape=(jax.ShapeDtypeStruct((num_tiles, 1, cp), jnp.float32),
                   jax.ShapeDtypeStruct((num_tiles, 1, cp), jnp.float32)),
        grid=(num_tiles,),
        in_specs=common_in_specs,
        out_specs=(pl.BlockSpec((1, 1, cp), lambda i: (i, 0, 0)),
                   pl.BlockSpec((1, 1, cp), lambda i: (i, 0, 0))),
        compiler_params=cparams,
    )(patches, wm)

    count = float(nw * g)                     # true element count (ignores padding)
    ssum = jnp.sum(psum, axis=(0, 1))
    ssq = jnp.sum(psq, axis=(0, 1))
    mean = ssum / count
    var = jnp.maximum(ssq / count - mean * mean, 0.0)
    gamma_p = jnp.pad(gamma.astype(jnp.float32), (0, cp - cout))
    beta_p = jnp.pad(beta.astype(jnp.float32), (0, cp - cout))
    scale = (gamma_p * jax.lax.rsqrt(var + float(eps))).reshape(1, cp)
    shift = (beta_p - mean.reshape(1, cp) * scale)

    # ---- pass 2: GEMM recompute + normalize + pool + ELU (cheap K=36 GEMM
    # recompute beats round-tripping the f32 conv output through HBM). ----
    # TODO(synk): for large Cin (K >~ 2*CP) stash the conv output in bf16
    # instead of recomputing; emit bf16/NHWC if the consumer tolerates it.
    out_padded = pl.pallas_call(
        epilogue_kernel,
        out_shape=jax.ShapeDtypeStruct((gp, cp), jnp.float32),
        grid=(num_tiles,),
        in_specs=common_in_specs + [
            pl.BlockSpec((1, cp), lambda i: (0, 0)),
            pl.BlockSpec((1, cp), lambda i: (0, 0)),
        ],
        out_specs=pl.BlockSpec((t, cp), lambda i: (i, 0)),
        compiler_params=cparams,
    )(patches, wm, scale, shift)

    out = out_padded[:g, :cout]               # drop row + channel padding
    return jnp.transpose(out.reshape(n, oh, ow, cout), (0, 3, 1, 2))


# ---------------------------------------------------------------------------
# Pure-JAX reference
# ---------------------------------------------------------------------------
def reference(x, w, b, gamma, beta, *, pool=(2, 4), eps=1e-5):
    y = jax.lax.conv_general_dilated(
        x, w, window_strides=(1, 1), padding=((1, 1), (1, 1)),
        dimension_numbers=("NCHW", "OIHW", "NCHW"),
        precision=jax.lax.Precision.HIGHEST)
    y = y + b.reshape(1, -1, 1, 1)
    mean = jnp.mean(y, axis=(0, 2, 3), keepdims=True)
    var = jnp.mean(jnp.square(y - mean), axis=(0, 2, 3), keepdims=True)
    y = (y - mean) * jax.lax.rsqrt(var + eps) * gamma.reshape(1, -1, 1, 1) \
        + beta.reshape(1, -1, 1, 1)
    y = jnp.where(y > 0, y, jnp.exp(jnp.minimum(y, 0.0)) - 1.0)
    y = jax.lax.reduce_window(
        y, -jnp.inf, jax.lax.max,
        (1, 1, pool[0], pool[1]), (1, 1, pool[0], pool[1]), "VALID")
    return y


if __name__ == "__main__":
    N, CIN, COUT, H, W = 2, 4, 8, 16, 16

    key = jax.random.PRNGKey(0)
    k1, k2, k3, k4, k5 = jax.random.split(key, 5)
    fan_in = CIN * 3 * 3
    bound = 1.0 / math.sqrt(fan_in)
    w = jax.random.uniform(k1, (COUT, CIN, 3, 3), jnp.float32, -bound, bound)
    b = jax.random.uniform(k2, (COUT,), jnp.float32, -bound, bound)
    gamma = jax.random.uniform(k4, (COUT,), jnp.float32, 0.5, 1.5)
    beta = 0.1 * jax.random.normal(k5, (COUT,), jnp.float32)
    x = jax.random.normal(k3, (N, CIN, H, W), jnp.float32)

    # row_tile=24 exercises both the multi-tile path and pad-and-mask
    # (G = N*OH*OW = 64 -> padded to 72 rows, 3 tiles).
    out = conv_block_forward(x, w, b, gamma, beta, row_tile=24)
    out = jax.block_until_ready(out)

    ref = reference(x, w, b, gamma, beta)
    assert out.shape == ref.shape == (N, COUT, H // 2, W // 4), (out.shape, ref.shape)
    assert bool(jnp.allclose(out, ref, atol=5e-2, rtol=5e-2)), "mismatch vs reference"

    print("KERNEL_OK")
</pallas_src>

<mosaic_0001>
module attributes {stable_mosaic.version = 11 : i64} {
  func.func @stats_kernel(%arg0: i32, %arg1: memref<8x24x36xbf16, #tpu.memory_space<vmem>>, %arg2: memref<36x128xbf16, #tpu.memory_space<vmem>>, %arg3: memref<1x1x128xf32, #tpu.memory_space<vmem>>, %arg4: memref<1x1x128xf32, #tpu.memory_space<vmem>>) attributes {dimension_semantics = [#tpu.dimension_semantics<parallel>], iteration_bounds = array<i64: 3>, scalar_prefetch = 0 : i64, scratch_operands = 0 : i64, tpu.core_type = #tpu.core_type<tc>, window_params = [{transform_indices = @transform_0, window_bounds = array<i64: 8, 24, 36>}, {pipeline_mode = #tpu.pipeline_mode<synchronous>, transform_indices = @transform_1, window_bounds = array<i64: 36, 128>}, {transform_indices = @transform_2, window_bounds = array<i64: 1, 1, 128>}, {transform_indices = @transform_3, window_bounds = array<i64: 1, 1, 128>}]} {
    %c0 = arith.constant 0 : index
    %c0_0 = arith.constant 0 : index
    %c0_1 = arith.constant 0 : index
    %0 = vector.load %arg1[%c0, %c0_0, %c0_1] : memref<8x24x36xbf16, #tpu.memory_space<vmem>>, vector<8x24x36xbf16>
    %1 = vector.shape_cast %0 : vector<8x24x36xbf16> to vector<192x36xbf16>
    %c0_2 = arith.constant 0 : index
    %c0_3 = arith.constant 0 : index
    %2 = vector.load %arg2[%c0_2, %c0_3] : memref<36x128xbf16, #tpu.memory_space<vmem>>, vector<36x128xbf16>
    %cst = arith.constant dense<0.000000e+00> : vector<192x128xf32>
    %3 = tpu.matmul %1, %2, %cst {dimension_numbers = #tpu.dot_dimension_numbers<[1], [0], [0], [1], [0, 0, 1, 1], [], []>} : vector<192x36xbf16>, vector<36x128xbf16>, vector<192x128xf32> -> vector<192x128xf32>
    %cst_4 = arith.constant dense<0.000000e+00> : vector<128xf32>
    %4 = vector.multi_reduction <add>, %3, %cst_4 [0] : vector<192x128xf32> to vector<128xf32>
    %5 = vector.shape_cast %4 : vector<128xf32> to vector<1x128xf32>
    %6 = vector.shape_cast %5 : vector<1x128xf32> to vector<1x1x128xf32>
    %c0_5 = arith.constant 0 : index
    %c0_6 = arith.constant 0 : index
    %c0_7 = arith.constant 0 : index
    %7 = vector.load %arg3[%c0_5, %c0_6, %c0_7] : memref<1x1x128xf32, #tpu.memory_space<vmem>>, vector<1x1x128xf32>
    tpu.vector_store %arg3[%c0_5, %c0_6, %c0_7], %6 {strides = array<i32>} : memref<1x1x128xf32, #tpu.memory_space<vmem>>, vector<1x1x128xf32>,
    %8 = arith.mulf %3, %3 : vector<192x128xf32>
    %cst_8 = arith.constant dense<0.000000e+00> : vector<128xf32>
    %9 = vector.multi_reduction <add>, %8, %cst_8 [0] : vector<192x128xf32> to vector<128xf32>
    %10 = vector.shape_cast %9 : vector<128xf32> to vector<1x128xf32>
    %11 = vector.shape_cast %10 : vector<1x128xf32> to vector<1x1x128xf32>
    %c0_9 = arith.constant 0 : index
    %c0_10 = arith.constant 0 : index
    %c0_11 = arith.constant 0 : index
    %12 = vector.load %arg4[%c0_9, %c0_10, %c0_11] : memref<1x1x128xf32, #tpu.memory_space<vmem>>, vector<1x1x128xf32>
    tpu.vector_store %arg4[%c0_9, %c0_10, %c0_11], %11 {strides = array<i32>} : memref<1x1x128xf32, #tpu.memory_space<vmem>>, vector<1x1x128xf32>,
    return
  }
  func.func @transform_0(%arg0: i32) -> (i32, i32, i32) {
    %c0_i32 = arith.constant 0 : i32
    %c0_i32_0 = arith.constant 0 : i32
    %c0_i32_1 = arith.constant 0 : i32
    return %c0_i32, %arg0, %c0_i32_0 : i32, i32, i32
  }
  func.func @transform_1(%arg0: i32) -> (i32, i32) {
    %c0_i32 = arith.constant 0 : i32
    %c0_i32_0 = arith.constant 0 : i32
    %c0_i32_1 = arith.constant 0 : i32
    return %c0_i32, %c0_i32_0 : i32, i32
  }
  func.func @transform_2(%arg0: i32) -> (i32, i32, i32) {
    %c0_i32 = arith.constant 0 : i32
    %c0_i32_0 = arith.constant 0 : i32
    %c0_i32_1 = arith.constant 0 : i32
    return %arg0, %c0_i32, %c0_i32_0 : i32, i32, i32
  }
  func.func @transform_3(%arg0: i32) -> (i32, i32, i32) {
    %c0_i32 = arith.constant 0 : i32
    %c0_i32_0 = arith.constant 0 : i32
    %c0_i32_1 = arith.constant 0 : i32
    return %arg0, %c0_i32, %c0_i32_0 : i32, i32, i32
  }
}

</mosaic_0001>

<llo_original>
// kernel: tpu_custom_call.1
$region0: #{tpu_custom_call.1}
  #allocation0 [shape = 'u32[]', space=smem, size = 0x4, offset = 0x4, fixed_abs, tag = 'smem constant byte address 0x4 - core index']
  #allocation1 [shape = 'u32[144,128]{1,0:T(1,128)}', space=vmem, size = 0x12000, scoped, tag = 'internal scratch']
  %s0 = inlined_call_operand.vmem [shape: bf16[8,72,36], index: 0, kind: input, shape index: {}]
  %s1 = inlined_call_operand.vmem [shape: bf16[36,128], index: 1, kind: input, shape index: {}]
  %s2 = inlined_call_operand.hbm [shape: f32[3,1,128], index: 2, kind: output, shape index: {0}]
  %s3 = inlined_call_operand.hbm [shape: f32[3,1,128], index: 3, kind: output, shape index: {1}]
  %4 = xla_tuple %s2, %s3
  %s5 = sld [smem:[#allocation0]]
  $region90: #{tpu_custom_call.1} parent=0
    _
  %s7 = ssub.s32 1, %s5
  %s8 = scalar_select 0, %s7, %s5
  $region1: #{tpu_custom_call.1} parent=0
    #allocation2 [shape = 'u8[98304]{0}', space=vmem, size = 0x18000, scoped, tag = 'input window, operand 0']
    #allocation3 [shape = 'u8[1024]{0}', space=vmem, size = 0x400, scoped, tag = 'output window, operand 0']
    #allocation4 [shape = 's32[2]{0}', space=sflag, size = 0x8, scoped, tag = 'scoped memory for tpu_custom_call.1']
    #allocation5 [shape = 'u8[1024]{0}', space=vmem, size = 0x400, scoped, tag = 'output window, operand 1']
    #allocation6 [shape = 's32[2]{0}', space=sflag, size = 0x8, scoped, tag = 'scoped memory for tpu_custom_call.1']
    %9 = vsyncpa [#allocation4], 0
    %s10 = scalar_lea.sflag [#allocation4], 1
    %11 = vsyncpa %s10, 0
    %12 = vsyncpa [#allocation6], 0
    %s13 = scalar_lea.sflag [#allocation6], 1
    %14 = vsyncpa %s13, 0
    loop: start=0, step=1, limit=5
    $region2: #{tpu_custom_call.1} parent=1 // loop_pre_header
      _
    $region3: #{tpu_custom_call.1} parent=1 // loop_header
      %s16 = sphi 0, %s20
      %p17 = scmp.ge.s32.totalorder %s16, 5
      %s26 = sphi 0, %s28
      %s29 = sphi 0, %s26
      %s30 = sphi 0, %s29
      %s46 = sphi 0, %s30
      %s50 = sphi 0, %s50
      %s52 = sphi 0, %s50
      %s53 = sphi 0, %s52
      %s67 = sphi 0, %s53
      %s73 = sphi 0, %s75
      %s76 = sphi 0, %s73
      %s77 = sphi 0, %s76
      %s93 = sphi 0, %s77
      %s99 = sphi 0, %s101
      %s102 = sphi 0, %s99
      %s103 = sphi 0, %s102
      %s119 = sphi 0, %s103
    $region4: #{tpu_custom_call.1} parent=1 // loop_header_branch
      %19 = sbr.rel (%p17) target = $region8
    $region5: #{tpu_custom_call.1} parent=1 // loop_body
      %s21 = ssub.s32 %s16, 1
      %s22 = ssub.s32 %s16, 2
      %s23 = sadd.s32 %s16, 1
      %s24 = ssub.s32 %s16, %s23
      %p25 = scmp.eq.s32.totalorder %s24, 0
      %s27 = sadd.s32 %s26, 1
      %s28 = scalar_select %p25, %s26, %s27
      %p31 = pneg %p25
      %p32 = scmp.eq.s32.totalorder %s16, 2
      %p33 = por %p31, %p32
      %p34 = scmp.ne.s32.totalorder %s26, %s29
      %p35 = scmp.eq.s32.totalorder %s16, 0
      %p36 = por %p34, %p35
      %p37 = scmp.ne.s32.totalorder %s26, %s29
      %p38 = scmp.eq.s32.totalorder %s21, 2
      %p39 = por %p37, %p38
      %p40 = scmp.ne.s32.totalorder %s29, %s30
      %p41 = scmp.eq.s32.totalorder %s21, 0
      %p42 = por %p40, %p41
      %p43 = scmp.ne.s32.totalorder %s29, %s30
      %p44 = scmp.eq.s32.totalorder %s22, 2
      %p45 = por %p43, %p44
      %p47 = scmp.ne.s32.totalorder %s30, %s46
      %p48 = scmp.eq.s32.totalorder %s22, 0
      %p49 = por %p47, %p48
      %s51 = sadd.s32 %s50, 1
      %p54 = scmp.eq.s32.totalorder %s16, 2
      %p55 = scmp.ne.s32.totalorder %s50, %s52
      %p56 = scmp.eq.s32.totalorder %s16, 0
      %p57 = por %p55, %p56
      %p58 = scmp.ne.s32.totalorder %s50, %s52
      %p59 = scmp.eq.s32.totalorder %s21, 2
      %p60 = por %p58, %p59
      %p61 = scmp.ne.s32.totalorder %s52, %s53
      %p62 = scmp.eq.s32.totalorder %s21, 0
      %p63 = por %p61, %p62
      %p64 = scmp.ne.s32.totalorder %s52, %s53
      %p65 = scmp.eq.s32.totalorder %s22, 2
      %p66 = por %p64, %p65
      %p68 = scmp.ne.s32.totalorder %s53, %s67
      %p69 = scmp.eq.s32.totalorder %s22, 0
      %p70 = por %p68, %p69
      %s71 = ssub.s32 %s16, %s23
      %p72 = scmp.eq.s32.totalorder %s71, 0
      %s74 = sadd.s32 %s73, 1
      %s75 = scalar_select %p72, %s73, %s74
      %p78 = pneg %p72
      %p79 = scmp.eq.s32.totalorder %s16, 2
      %p80 = por %p78, %p79
      %p81 = scmp.ne.s32.totalorder %s73, %s76
      %p82 = scmp.eq.s32.totalorder %s16, 0
      %p83 = por %p81, %p82
      %p84 = scmp.ne.s32.totalorder %s73, %s76
      %p85 = scmp.eq.s32.totalorder %s21, 2
      %p86 = por %p84, %p85
      %p87 = scmp.ne.s32.totalorder %s76, %s77
      %p88 = scmp.eq.s32.totalorder %s21, 0
      %p89 = por %p87, %p88
      %p90 = scmp.ne.s32.totalorder %s76, %s77
      %p91 = scmp.eq.s32.totalorder %s22, 2
      %p92 = por %p90, %p91
      %p94 = scmp.ne.s32.totalorder %s77, %s93
      %p95 = scmp.eq.s32.totalorder %s22, 0
      %p96 = por %p94, %p95
      %s97 = ssub.s32 %s16, %s23
      %p98 = scmp.eq.s32.totalorder %s97, 0
      %s100 = sadd.s32 %s99, 1
      %s101 = scalar_select %p98, %s99, %s100
      %p104 = pneg %p98
      %p105 = scmp.eq.s32.totalorder %s16, 2
      %p106 = por %p104, %p105
      %p107 = scmp.ne.s32.totalorder %s99, %s102
      %p108 = scmp.eq.s32.totalorder %s16, 0
      %p109 = por %p107, %p108
      %p110 = scmp.ne.s32.totalorder %s99, %s102
      %p111 = scmp.eq.s32.totalorder %s21, 2
      %p112 = por %p110, %p111
      %p113 = scmp.ne.s32.totalorder %s102, %s103
      %p114 = scmp.eq.s32.totalorder %s21, 0
      %p115 = por %p113, %p114
      %p116 = scmp.ne.s32.totalorder %s102, %s103
      %p117 = scmp.eq.s32.totalorder %s22, 2
      %p118 = por %p116, %p117
      %p120 = scmp.ne.s32.totalorder %s103, %s119
      %p121 = scmp.eq.s32.totalorder %s22, 0
      %p122 = por %p120, %p121
      %p123 = scmp.le.s32.totalorder 1, %s16
      %p124 = scmp.lt.s32.totalorder %s16, 4
      %p125 = pnand %p123, %p124
      %p126 = pneg %p125
      // Predicated region
      $region9: #{tpu_custom_call.1} parent=5 // pred_check
        _
      $region10: #{tpu_custom_call.1} parent=5 // pred_check_branch
        %128 = sbr.rel (%p125) target = $region12
      $region11: #{tpu_custom_call.1} parent=5 // pred_region
        %s129 = ssub.s32 %s16, 1
        // Predicated region
        $region13: #{tpu_custom_call.1} parent=11 // pred_check
          %p130 = pneg %p63
        $region14: #{tpu_custom_call.1} parent=11 // pred_check_branch
          %132 = sbr.rel (%p130) target = $region16
        $region15: #{tpu_custom_call.1} parent=11 // pred_region
          _
        $region16: #{tpu_custom_call.1} parent=11 // pred_fallthru
          _
      $region12: #{tpu_custom_call.1} parent=5 // pred_fallthru
        _
      %p133 = scmp.lt.s32.totalorder %s16, 3
      // Predicated region
      $region17: #{tpu_custom_call.1} parent=5 // pred_check
        %p134 = pneg %p133
      $region18: #{tpu_custom_call.1} parent=5 // pred_check_branch
        %136 = sbr.rel (%p134) target = $region20
      $region19: #{tpu_custom_call.1} parent=5 // pred_region
        // Predicated region
        $region21: #{tpu_custom_call.1} parent=19 // pred_check
          %p137 = pneg %p36
        $region22: #{tpu_custom_call.1} parent=19 // pred_check_branch
          %139 = sbr.rel (%p137) target = $region24
        $region23: #{tpu_custom_call.1} parent=19 // pred_region
          %s140 = sand.u32 %s26, 1
          %s141 = sand.u32 %s26, 1
          %s142 = smul.addr %s141, 96
          %s143 = scalar_lea.vmem [#allocation2], %s142
          %s144 = smul.u32 3, %s16
          %s145 = smul.addr %s144, 4
          %s146 = scalar_lea.vmem %s0, %s145
          // Predicated region
          $region25: #{tpu_custom_call.1} parent=23 // pred_check
            _
          $region26: #{tpu_custom_call.1} parent=23 // pred_check_branch
            %148 = sbr.rel (0) target = $region28
          $region27: #{tpu_custom_call.1} parent=23 // pred_region
            // Predicated region
            $region29: #{tpu_custom_call.1} parent=27 // pred_check
              _
            $region30: #{tpu_custom_call.1} parent=27 // pred_check_branch
              %150 = sbr.rel target = $region32
            $region31: #{tpu_custom_call.1} parent=27 // pred_region
              // Predicated region
              $region44: #{tpu_custom_call.1} parent=31 // pred_check
                _
              $region45: #{tpu_custom_call.1} parent=31 // pred_check_branch
                %211 = sbr.rel (0) target = $region47
              $region46: #{tpu_custom_call.1} parent=31 // pred_region
                loop: start=0, step=1, limit=1
                $region48: #{tpu_custom_call.1} parent=46 // loop_pre_header
                  _
                $region49: #{tpu_custom_call.1} parent=46 // loop_header
                  %s213 = sphi 0, %s217
                  %p214 = scmp.ge.s32.totalorder %s213, 1
                  %s218 = sphi %s146, %s146
                  %s219 = sphi %s143, %s143
                $region50: #{tpu_custom_call.1} parent=46 // loop_header_branch
                  %216 = sbr.rel (%p214) target = $region54
                $region51: #{tpu_custom_call.1} parent=46 // loop_body
                  _
                $region52: #{tpu_custom_call.1} parent=46 // loop_footer
                  %s217 = sadd.s32 1, %s213
                $region53: #{tpu_custom_call.1} parent=46 // loop_footer_branch
                  %212 = sbr.rel target = $region49
                $region54: #{tpu_custom_call.1} parent=46 // loop_exit
                  _
                loop: start=0, step=1, limit=1
                $region55: #{tpu_custom_call.1} parent=46 // loop_pre_header
                  _
                $region56: #{tpu_custom_call.1} parent=46 // loop_header
                  %s222 = sphi 0, %s226
                  %p223 = scmp.ge.s32.totalorder %s222, 1
                  %s227 = sphi %s146, %s146
                  %s228 = sphi %s143, %s143
                $region57: #{tpu_custom_call.1} parent=46 // loop_header_branch
                  %225 = sbr.rel (%p223) target = $region61
                $region58: #{tpu_custom_call.1} parent=46 // loop_body
                  %v229 = vld [vmem:[%s227] sm:$0xf]
                  %230 = vst [vmem:[%s228] sm:$0xf] %v229
                  %v231 = vld [vmem:[%s227 + $0x4] sm:$0xf]
                  %232 = vst [vmem:[%s228 + $0x4] sm:$0xf] %v231
                  %v233 = vld [vmem:[%s227 + $0x8] sm:$0xf]
                  %234 = vst [vmem:[%s228 + $0x8] sm:$0xf] %v233
                  %v235 = vld [vmem:[%s227 + $0x24] sm:$0xf]
                  %236 = vst [vmem:[%s228 + $0xc] sm:$0xf] %v235
                  %v237 = vld [vmem:[%s227 + $0x28] sm:$0xf]
                  %238 = vst [vmem:[%s228 + $0x10] sm:$0xf] %v237
                  %v239 = vld [vmem:[%s227 + $0x2c] sm:$0xf]
                  %240 = vst [vmem:[%s228 + $0x14] sm:$0xf] %v239
                  %v241 = vld [vmem:[%s227 + $0x48] sm:$0xf]
                  %242 = vst [vmem:[%s228 + $0x18] sm:$0xf] %v241
                  %v243 = vld [vmem:[%s227 + $0x4c] sm:$0xf]
                  %244 = vst [vmem:[%s228 + $0x1c] sm:$0xf] %v243
                  %v245 = vld [vmem:[%s227 + $0x50] sm:$0xf]
                  %246 = vst [vmem:[%s228 + $0x20] sm:$0xf] %v245
                  %v247 = vld [vmem:[%s227 + $0x6c] sm:$0xf]
                  %248 = vst [vmem:[%s228 + $0x24] sm:$0xf] %v247
                  %v249 = vld [vmem:[%s227 + $0x70] sm:$0xf]
                  %250 = vst [vmem:[%s228 + $0x28] sm:$0xf] %v249
                  %v251 = vld [vmem:[%s227 + $0x74] sm:$0xf]
                  %252 = vst [vmem:[%s228 + $0x2c] sm:$0xf] %v251
                  %v253 = vld [vmem:[%s227 + $0x90] sm:$0xf]
                  %254 = vst [vmem:[%s228 + $0x30] sm:$0xf] %v253
                  %v255 = vld [vmem:[%s227 + $0x94] sm:$0xf]
                  %256 = vst [vmem:[%s228 + $0x34] sm:$0xf] %v255
                  %v257 = vld [vmem:[%s227 + $0x98] sm:$0xf]
                  %258 = vst [vmem:[%s228 + $0x38] sm:$0xf] %v257
                  %v259 = vld [vmem:[%s227 + $0xb4] sm:$0xf]
                  %260 = vst [vmem:[%s228 + $0x3c] sm:$0xf] %v259
                  %v261 = vld [vmem:[%s227 + $0xb8] sm:$0xf]
                  %262 = vst [vmem:[%s228 + $0x40] sm:$0xf] %v261
                  %v263 = vld [vmem:[%s227 + $0xbc] sm:$0xf]
                  %264 = vst [vmem:[%s228 + $0x44] sm:$0xf] %v263
                  %v265 = vld [vmem:[%s227 + $0xd8] sm:$0xf]
                  %266 = vst [vmem:[%s228 + $0x48] sm:$0xf] %v265
                  %v267 = vld [vmem:[%s227 + $0xdc] sm:$0xf]
                  %268 = vst [vmem:[%s228 + $0x4c] sm:$0xf] %v267
                  %v269 = vld [vmem:[%s227 + $0xe0] sm:$0xf]
                  %270 = vst [vmem:[%s228 + $0x50] sm:$0xf] %v269
                  %v271 = vld [vmem:[%s227 + $0xfc] sm:$0xf]
                  %272 = vst [vmem:[%s228 + $0x54] sm:$0xf] %v271
                  %v273 = vld [vmem:[%s227 + $0x100] sm:$0xf]
                  %274 = vst [vmem:[%s228 + $0x58] sm:$0xf] %v273
                  %v275 = vld [vmem:[%s227 + $0x104] sm:$0xf]
                  %276 = vst [vmem:[%s228 + $0x5c] sm:$0xf] %v275
                $region59: #{tpu_custom_call.1} parent=46 // loop_footer
                  %s226 = sadd.s32 1, %s222
                $region60: #{tpu_custom_call.1} parent=46 // loop_footer_branch
                  %221 = sbr.rel target = $region56
                $region61: #{tpu_custom_call.1} parent=46 // loop_exit
                  _
              $region47: #{tpu_custom_call.1} parent=31 // pred_fallthru
                _
            $region32: #{tpu_custom_call.1} parent=27 // pred_fallthru
              _
            // Predicated region
            $region33: #{tpu_custom_call.1} parent=27 // pred_check
              _
            $region34: #{tpu_custom_call.1} parent=27 // pred_check_branch
              %152 = sbr.rel (0) target = $region36
            $region35: #{tpu_custom_call.1} parent=27 // pred_region
              loop: start=0, step=1, limit=1
              $region37: #{tpu_custom_call.1} parent=35 // loop_pre_header
                _
              $region38: #{tpu_custom_call.1} parent=35 // loop_header
                %s155 = sphi 0, %s159
                %p156 = scmp.ge.s32.totalorder %s155, 1
                %s160 = sphi %s146, %s146
                %s161 = sphi %s143, %s143
              $region39: #{tpu_custom_call.1} parent=35 // loop_header_branch
                %158 = sbr.rel (%p156) target = $region43
              $region40: #{tpu_custom_call.1} parent=35 // loop_body
                %v162 = vld [vmem:[%s160] sm:$0xf]
                %163 = vst [vmem:[%s161] sm:$0xf] %v162
                %v164 = vld [vmem:[%s160 + $0x4] sm:$0xf]
                %165 = vst [vmem:[%s161 + $0x4] sm:$0xf] %v164
                %v166 = vld [vmem:[%s160 + $0x8] sm:$0xf]
                %167 = vst [vmem:[%s161 + $0x8] sm:$0xf] %v166
                %v168 = vld [vmem:[%s160 + $0x24] sm:$0xf]
                %169 = vst [vmem:[%s161 + $0xc] sm:$0xf] %v168
                %v170 = vld [vmem:[%s160 + $0x28] sm:$0xf]
                %171 = vst [vmem:[%s161 + $0x10] sm:$0xf] %v170
                %v172 = vld [vmem:[%s160 + $0x2c] sm:$0xf]
                %173 = vst [vmem:[%s161 + $0x14] sm:$0xf] %v172
                %v174 = vld [vmem:[%s160 + $0x48] sm:$0xf]
                %175 = vst [vmem:[%s161 + $0x18] sm:$0xf] %v174
                %v176 = vld [vmem:[%s160 + $0x4c] sm:$0xf]
                %177 = vst [vmem:[%s161 + $0x1c] sm:$0xf] %v176
                %v178 = vld [vmem:[%s160 + $0x50] sm:$0xf]
                %179 = vst [vmem:[%s161 + $0x20] sm:$0xf] %v178
                %v180 = vld [vmem:[%s160 + $0x6c] sm:$0xf]
                %181 = vst [vmem:[%s161 + $0x24] sm:$0xf] %v180
                %v182 = vld [vmem:[%s160 + $0x70] sm:$0xf]
                %183 = vst [vmem:[%s161 + $0x28] sm:$0xf] %v182
                %v184 = vld [vmem:[%s160 + $0x74] sm:$0xf]
                %185 = vst [vmem:[%s161 + $0x2c] sm:$0xf] %v184
                %v186 = vld [vmem:[%s160 + $0x90] sm:$0xf]
                %187 = vst [vmem:[%s161 + $0x30] sm:$0xf] %v186
                %v188 = vld [vmem:[%s160 + $0x94] sm:$0xf]
                %189 = vst [vmem:[%s161 + $0x34] sm:$0xf] %v188
                %v190 = vld [vmem:[%s160 + $0x98] sm:$0xf]
                %191 = vst [vmem:[%s161 + $0x38] sm:$0xf] %v190
                %v192 = vld [vmem:[%s160 + $0xb4] sm:$0xf]
                %193 = vst [vmem:[%s161 + $0x3c] sm:$0xf] %v192
                %v194 = vld [vmem:[%s160 + $0xb8] sm:$0xf]
                %195 = vst [vmem:[%s161 + $0x40] sm:$0xf] %v194
                %v196 = vld [vmem:[%s160 + $0xbc] sm:$0xf]
                %197 = vst [vmem:[%s161 + $0x44] sm:$0xf] %v196
                %v198 = vld [vmem:[%s160 + $0xd8] sm:$0xf]
                %199 = vst [vmem:[%s161 + $0x48] sm:$0xf] %v198
                %v200 = vld [vmem:[%s160 + $0xdc] sm:$0xf]
                %201 = vst [vmem:[%s161 + $0x4c] sm:$0xf] %v200
                %v202 = vld [vmem:[%s160 + $0xe0] sm:$0xf]
                %203 = vst [vmem:[%s161 + $0x50] sm:$0xf] %v202
                %v204 = vld [vmem:[%s160 + $0xfc] sm:$0xf]
                %205 = vst [vmem:[%s161 + $0x54] sm:$0xf] %v204
                %v206 = vld [vmem:[%s160 + $0x100] sm:$0xf]
                %207 = vst [vmem:[%s161 + $0x58] sm:$0xf] %v206
                %v208 = vld [vmem:[%s160 + $0x104] sm:$0xf]
                %209 = vst [vmem:[%s161 + $0x5c] sm:$0xf] %v208
              $region41: #{tpu_custom_call.1} parent=35 // loop_footer
                %s159 = sadd.s32 1, %s155
              $region42: #{tpu_custom_call.1} parent=35 // loop_footer_branch
                %154 = sbr.rel target = $region38
              $region43: #{tpu_custom_call.1} parent=35 // loop_exit
                _
            $region36: #{tpu_custom_call.1} parent=27 // pred_fallthru
              _
          $region28: #{tpu_custom_call.1} parent=23 // pred_fallthru
            _
          %277 = vnop
        $region24: #{tpu_custom_call.1} parent=19 // pred_fallthru
          _
      $region20: #{tpu_custom_call.1} parent=5 // pred_fallthru
        _
      %p278 = scmp.le.s32.totalorder 1, %s16
      %p279 = scmp.lt.s32.totalorder %s16, 4
      %p280 = pnand %p278, %p279
      %p281 = pneg %p280
      // Predicated region
      $region62: #{tpu_custom_call.1} parent=5 // pred_check
        _
      $region63: #{tpu_custom_call.1} parent=5 // pred_check_branch
        %283 = sbr.rel (%p280) target = $region65
      $region64: #{tpu_custom_call.1} parent=5 // pred_region
        %s284 = ssub.s32 %s16, 1
        %s285 = sand.u32 %s29, 1
        %s286 = sand.u32 %s29, 1
        %s287 = smul.addr %s286, 96
        %s288 = scalar_lea.vmem [#allocation2], %s287
        // Predicated region
        $region66: #{tpu_custom_call.1} parent=64 // pred_check
          %p289 = pneg %p42
        $region67: #{tpu_custom_call.1} parent=64 // pred_check_branch
          %291 = sbr.rel (%p289) target = $region69
        $region68: #{tpu_custom_call.1} parent=64 // pred_region
          _
        $region69: #{tpu_custom_call.1} parent=64 // pred_fallthru
          _
        %s292 = sand.u32 %s29, 1
        %s293 = sand.u32 %s29, 1
        %s294 = smul.addr %s293, 96
        %s295 = scalar_lea.vmem [#allocation2], %s294
        %p296 = pneg %p42
        %p297 = pneg %p39
        %p298 = pneg %p63
        %p299 = pneg %p60
        %p300 = pneg %p89
        %p301 = pneg %p86
        %s302 = sand.u32 %s76, 1
        %s303 = scalar_lea.sflag [#allocation4], %s302
        %s304 = sand.u32 %s76, 1
        %s305 = scalar_lea.vmem [#allocation3], %s304
        %p306 = pneg %p115
        %p307 = pneg %p112
        %s308 = sand.u32 %s102, 1
        %s309 = scalar_lea.sflag [#allocation6], %s308
        %s310 = sand.u32 %s102, 1
        %s311 = scalar_lea.vmem [#allocation5], %s310
        %s312 = smul.u32 3, %s21
        %v314 = vld [vmem:[%s288] sm:$0xf]
        %v315 = vld [vmem:[%s288 + $0x4] sm:$0xf]
        %v316 = vld [vmem:[%s288 + $0x8] sm:$0xf]
        %v317 = vld [vmem:[%s288 + $0xc] sm:$0xf]
        %v318 = vld [vmem:[%s288 + $0x10] sm:$0xf]
        %v319 = vld [vmem:[%s288 + $0x14] sm:$0xf]
        %v320 = vld [vmem:[%s288 + $0x18] sm:$0xf]
        %v321 = vld [vmem:[%s288 + $0x1c] sm:$0xf]
        %v322 = vld [vmem:[%s288 + $0x20] sm:$0xf]
        %v323 = vld [vmem:[%s288 + $0x24] sm:$0xf]
        %v324 = vld [vmem:[%s288 + $0x28] sm:$0xf]
        %v325 = vld [vmem:[%s288 + $0x2c] sm:$0xf]
        %v326 = vld [vmem:[%s288 + $0x30] sm:$0xf]
        %v327 = vld [vmem:[%s288 + $0x34] sm:$0xf]
        %v328 = vld [vmem:[%s288 + $0x38] sm:$0xf]
        %v329 = vld [vmem:[%s288 + $0x3c] sm:$0xf]
        %v330 = vld [vmem:[%s288 + $0x40] sm:$0xf]
        %v331 = vld [vmem:[%s288 + $0x44] sm:$0xf]
        %v332 = vld [vmem:[%s288 + $0x48] sm:$0xf]
        %v333 = vld [vmem:[%s288 + $0x4c] sm:$0xf]
        %v334 = vld [vmem:[%s288 + $0x50] sm:$0xf]
        %v335 = vld [vmem:[%s288 + $0x54] sm:$0xf]
        %v336 = vld [vmem:[%s288 + $0x58] sm:$0xf]
        %v337 = vld [vmem:[%s288 + $0x5c] sm:$0xf]
        %v338 = vld [vmem:[%s1] sm:$0xf]
        %v339 = vld [vmem:[%s1 + $0x4] sm:$0xf]
        %v340 = vld [vmem:[%s1 + $0x8] sm:$0xf]
        %v341 = vld [vmem:[%s1 + $0xc] sm:$0xf]
        %v342 = vld [vmem:[%s1 + $0x10] sm:$0x3]
        %v367 = vunpack.c.l.b16 %v314
        %v368 = vunpack.c.l.b16 %v315
        %v369 = vunpack.c.l.b16 %v316
        %v370 = vunpack.c.l.b16 %v317
        %v371 = vunpack.c.l.b16 %v318
        %v372 = vunpack.c.l.b16 %v319
        %v373 = vunpack.c.l.b16 %v320
        %v374 = vunpack.c.l.b16 %v321
        %v375 = vunpack.c.l.b16 %v322
        %v376 = vunpack.c.l.b16 %v323
        %v377 = vunpack.c.l.b16 %v324
        %v378 = vunpack.c.l.b16 %v325
        %v379 = vunpack.c.l.b16 %v326
        %v380 = vunpack.c.l.b16 %v327
        %v381 = vunpack.c.l.b16 %v328
        %v382 = vunpack.c.l.b16 %v329
        %v383 = vunpack.c.l.b16 %v330
        %v384 = vunpack.c.l.b16 %v331
        %v385 = vunpack.c.l.b16 %v332
        %v386 = vunpack.c.l.b16 %v333
        %v387 = vunpack.c.l.b16 %v334
        %v388 = vunpack.c.l.b16 %v335
        %v389 = vunpack.c.l.b16 %v336
        %v390 = vunpack.c.l.b16 %v337
        %v391 = vpack.c.b16 %v368, %v367
        %v392 = vpack.c.b16 %v370, %v369
        %v393 = vpack.c.b16 %v372, %v371
        %v394 = vpack.c.b16 %v374, %v373
        %v395 = vpack.c.b16 %v376, %v375
        %v396 = vpack.c.b16 %v378, %v377
        %v397 = vpack.c.b16 %v380, %v379
        %v398 = vpack.c.b16 %v382, %v381
        %v399 = vpack.c.b16 %v384, %v383
        %v400 = vpack.c.b16 %v386, %v385
        %v401 = vpack.c.b16 %v388, %v387
        %v402 = vpack.c.b16 %v390, %v389
        %v408 = vunpack.c.l.b16 %v338
        %v409 = vunpack.c.l.b16 %v339
        %v410 = vunpack.c.l.b16 %v340
        %v411 = vunpack.c.l.b16 %v341
        %v412 = vunpack.c.l.b16 %v342
        %v413 = vpack.c.b16 %v409, %v408
        %v414 = vpack.c.b16 %v411, %v410
        %v415 = vpack.c.b16 %v412, %v412
        %vm418 = vcmask 293888
        %v420 = vsel %vm418, %v391, 0
        %v423 = vsel %vm418, %v392, 0
        %v426 = vsel %vm418, %v393, 0
        %v429 = vsel %vm418, %v394, 0
        %v432 = vsel %vm418, %v395, 0
        %v435 = vsel %vm418, %v396, 0
        %v438 = vsel %vm418, %v397, 0
        %v441 = vsel %vm418, %v398, 0
        %v444 = vsel %vm418, %v399, 0
        %v447 = vsel %vm418, %v400, 0
        %v450 = vsel %vm418, %v401, 0
        %v453 = vsel %vm418, %v402, 0
        %vm455 = vcmask 1041408
        %v457 = vsel %vm455, %v415, 0
        %459 = vmatprep.subr.bf16.mxu0 0
        %460 = vmatpush1.bf16.msra.mxu0 %v413
        %461 = vmatprep.subr.bf16.mxu0 0
        %462 = vmatpush1.bf16.msra.mxu0 %v414
        %463 = vmatprep.subr.bf16.mxu0 0
        %464 = vmatpush1.bf16.msra.mxu0 %v457
        %465 = vmatprep.subr.bf16.mxu0 0
        %466 = vmatpush1.bf16.msra.mxu0 0
        %467 = vmatprep.subr.bf16.mxu0 0
        %468 = vmatpush1.bf16.msra.mxu0 0
        %469 = vmatprep.subr.bf16.mxu0 0
        %470 = vmatpush1.bf16.msra.mxu0 0
        %471 = vmatprep.subr.bf16.mxu0 0
        %472 = vmatpush1.bf16.msra.mxu0 0
        %473 = vmatprep.subr.bf16.mxu0 0
        %474 = vmatpush1.bf16.msra.mxu0 0
        %475 = vmatprep.subr.bf16.mxu0 0
        %476 = vmatpush1.bf16.msra.mxu0 0
        %477 = vmatprep.subr.bf16.mxu0 0
        %478 = vmatpush1.bf16.msra.mxu0 0
        %479 = vmatprep.subr.bf16.mxu0 0
        %480 = vmatpush1.bf16.msra.mxu0 0
        %481 = vmatprep.subr.bf16.mxu0 0
        %482 = vmatpush1.bf16.msra.mxu0 0
        %483 = vmatprep.subr.bf16.mxu0 0
        %484 = vmatpush1.bf16.msra.mxu0 0
        %485 = vmatprep.subr.bf16.mxu0 0
        %486 = vmatpush1.bf16.msra.mxu0 0
        %487 = vmatprep.subr.bf16.mxu0 0
        %488 = vmatpush1.bf16.msra.mxu0 0
        %489 = vmatprep.subr.bf16.mxu0 0
        %490 = vmatpush1.bf16.msra.mxu0 0
        %491 = vmatprep.mubr.bf16.mxu0 0
        %492 = vmatmul.mubr.bf16.gmra.mrb[0].mxu0 %v420
        %v493 = vpop.f32.mrb[0].mxu0
        %v494 = vadd.f32 0.0, %v493
        %v495 = vpop.f32.mrb[0].mxu0
        %v496 = vpop.f32.mrb[0].mxu0
        %v497 = vadd.f32 0.0, %v496
        %v498 = vpop.f32.mrb[0].mxu0
        %499 = vmatprep.mubr.bf16.mxu0 0
        %500 = vmatmul.mubr.bf16.gmra.mrb[0].mxu0 %v423
        %v501 = vpop.f32.mrb[0].mxu0
        %v502 = vadd.f32 0.0, %v501
        %v503 = vpop.f32.mrb[0].mxu0
        %v504 = vpop.f32.mrb[0].mxu0
        %v505 = vadd.f32 0.0, %v504
        %v506 = vpop.f32.mrb[0].mxu0
        %507 = vmatprep.mubr.bf16.mxu0 0
        %508 = vmatmul.mubr.bf16.gmra.mrb[0].mxu0 %v426
        %v509 = vpop.f32.mrb[0].mxu0
        %v510 = vadd.f32 0.0, %v509
        %v511 = vpop.f32.mrb[0].mxu0
        %v512 = vpop.f32.mrb[0].mxu0
        %v513 = vadd.f32 0.0, %v512
        %v514 = vpop.f32.mrb[0].mxu0
        %515 = vmatprep.mubr.bf16.mxu0 0
        %516 = vmatmul.mubr.bf16.gmra.mrb[0].mxu0 %v429
        %v517 = vpop.f32.mrb[0].mxu0
        %v518 = vadd.f32 0.0, %v517
        %v519 = vpop.f32.mrb[0].mxu0
        %v520 = vpop.f32.mrb[0].mxu0
        %v521 = vadd.f32 0.0, %v520
        %v522 = vpop.f32.mrb[0].mxu0
        %523 = vmatprep.mubr.bf16.mxu0 0
        %524 = vmatmul.mubr.bf16.gmra.mrb[0].mxu0 %v432
        %v525 = vpop.f32.mrb[0].mxu0
        %v526 = vadd.f32 0.0, %v525
        %v527 = vpop.f32.mrb[0].mxu0
        %v528 = vpop.f32.mrb[0].mxu0
        %v529 = vadd.f32 0.0, %v528
        %v530 = vpop.f32.mrb[0].mxu0
        %531 = vmatprep.mubr.bf16.mxu0 0
        %532 = vmatmul.mubr.bf16.gmra.mrb[0].mxu0 %v435
        %v533 = vpop.f32.mrb[0].mxu0
        %v534 = vadd.f32 0.0, %v533
        %v535 = vpop.f32.mrb[0].mxu0
        %v536 = vpop.f32.mrb[0].mxu0
        %v537 = vadd.f32 0.0, %v536
        %v538 = vpop.f32.mrb[0].mxu0
        %539 = vmatprep.mubr.bf16.mxu0 0
        %540 = vmatmul.mubr.bf16.gmra.mrb[0].mxu0 %v438
        %v541 = vpop.f32.mrb[0].mxu0
        %v542 = vadd.f32 0.0, %v541
        %v543 = vpop.f32.mrb[0].mxu0
        %v544 = vpop.f32.mrb[0].mxu0
        %v545 = vadd.f32 0.0, %v544
        %v546 = vpop.f32.mrb[0].mxu0
        %547 = vmatprep.mubr.bf16.mxu0 0
        %548 = vmatmul.mubr.bf16.gmra.mrb[0].mxu0 %v441
        %v549 = vpop.f32.mrb[0].mxu0
        %v550 = vadd.f32 0.0, %v549
        %v551 = vpop.f32.mrb[0].mxu0
        %v552 = vpop.f32.mrb[0].mxu0
        %v553 = vadd.f32 0.0, %v552
        %v554 = vpop.f32.mrb[0].mxu0
        %555 = vmatprep.mubr.bf16.mxu0 0
        %556 = vmatmul.mubr.bf16.gmra.mrb[0].mxu0 %v444
        %v557 = vpop.f32.mrb[0].mxu0
        %v558 = vadd.f32 0.0, %v557
        %v559 = vpop.f32.mrb[0].mxu0
        %v560 = vpop.f32.mrb[0].mxu0
        %v561 = vadd.f32 0.0, %v560
        %v562 = vpop.f32.mrb[0].mxu0
        %563 = vmatprep.mubr.bf16.mxu0 0
        %564 = vmatmul.mubr.bf16.gmra.mrb[0].mxu0 %v447
        %v565 = vpop.f32.mrb[0].mxu0
        %v566 = vadd.f32 0.0, %v565
        %v567 = vpop.f32.mrb[0].mxu0
        %v568 = vpop.f32.mrb[0].mxu0
        %v569 = vadd.f32 0.0, %v568
        %v570 = vpop.f32.mrb[0].mxu0
        %571 = vmatprep.mubr.bf16.mxu0 0
        %572 = vmatmul.mubr.bf16.gmra.mrb[0].mxu0 %v450
        %v573 = vpop.f32.mrb[0].mxu0
        %v574 = vadd.f32 0.0, %v573
        %v575 = vpop.f32.mrb[0].mxu0
        %v576 = vpop.f32.mrb[0].mxu0
        %v577 = vadd.f32 0.0, %v576
        %v578 = vpop.f32.mrb[0].mxu0
        %579 = vmatprep.mubr.bf16.mxu0 0
        %580 = vmatmul.mubr.bf16.gmra.mrb[0].mxu0 %v453
        %v581 = vpop.f32.mrb[0].mxu0
        %v582 = vadd.f32 0.0, %v581
        %v583 = vpop.f32.mrb[0].mxu0
        %v584 = vpop.f32.mrb[0].mxu0
        %v585 = vadd.f32 0.0, %v584
        %v586 = vpop.f32.mrb[0].mxu0
        %587 = vdwg.mxu0
        %v588 = vadd.f32 %v494, %v497
        %v589 = vadd.f32 %v588, %v502
        %v590 = vadd.f32 %v589, %v505
        %v591 = vadd.f32 %v590, %v510
        %v592 = vadd.f32 %v591, %v513
        %v593 = vadd.f32 %v592, %v518
        %v594 = vadd.f32 %v593, %v521
        %v595 = vadd.f32 %v594, %v526
        %v596 = vadd.f32 %v595, %v529
        %v597 = vadd.f32 %v596, %v534
        %v598 = vadd.f32 %v597, %v537
        %v599 = vadd.f32 %v598, %v542
        %v600 = vadd.f32 %v599, %v545
        %v601 = vadd.f32 %v600, %v550
        %v602 = vadd.f32 %v601, %v553
        %v603 = vadd.f32 %v602, %v558
        %v604 = vadd.f32 %v603, %v561
        %v605 = vadd.f32 %v604, %v566
        %v606 = vadd.f32 %v605, %v569
        %v607 = vadd.f32 %v606, %v574
        %v608 = vadd.f32 %v607, %v577
        %v609 = vadd.f32 %v608, %v582
        %v610 = vadd.f32 %v609, %v585
        %v611 = vrot.slane %v610, 4
        %v612 = vadd.f32 %v610, %v611
        %v613 = vrot.slane %v612, 2
        %v614 = vadd.f32 %v612, %v613
        %v615 = vrot.slane %v614, 1
        %v616 = vadd.f32 %v614, %v615
        %617 = vst [vmem:[%s305] sm:$0x1] %v616
        %v618 = vmul.f32 %v494, %v494
        %v619 = vmul.f32 %v497, %v497
        %v620 = vmul.f32 %v502, %v502
        %v621 = vmul.f32 %v505, %v505
        %v622 = vmul.f32 %v510, %v510
        %v623 = vmul.f32 %v513, %v513
        %v624 = vmul.f32 %v518, %v518
        %v625 = vmul.f32 %v521, %v521
        %v626 = vmul.f32 %v526, %v526
        %v627 = vmul.f32 %v529, %v529
        %v628 = vmul.f32 %v534, %v534
        %v629 = vmul.f32 %v537, %v537
        %v630 = vmul.f32 %v542, %v542
        %v631 = vmul.f32 %v545, %v545
        %v632 = vmul.f32 %v550, %v550
        %v633 = vmul.f32 %v553, %v553
        %v634 = vmul.f32 %v558, %v558
        %v635 = vmul.f32 %v561, %v561
        %v636 = vmul.f32 %v566, %v566
        %v637 = vmul.f32 %v569, %v569
        %v638 = vmul.f32 %v574, %v574
        %v639 = vmul.f32 %v577, %v577
        %v640 = vmul.f32 %v582, %v582
        %v641 = vmul.f32 %v585, %v585
        %v642 = vadd.f32 %v618, %v619
        %v643 = vadd.f32 %v642, %v620
        %v644 = vadd.f32 %v643, %v621
        %v645 = vadd.f32 %v644, %v622
        %v646 = vadd.f32 %v645, %v623
        %v647 = vadd.f32 %v646, %v624
        %v648 = vadd.f32 %v647, %v625
        %v649 = vadd.f32 %v648, %v626
        %v650 = vadd.f32 %v649, %v627
        %v651 = vadd.f32 %v650, %v628
        %v652 = vadd.f32 %v651, %v629
        %v653 = vadd.f32 %v652, %v630
        %v654 = vadd.f32 %v653, %v631
        %v655 = vadd.f32 %v654, %v632
        %v656 = vadd.f32 %v655, %v633
        %v657 = vadd.f32 %v656, %v634
        %v658 = vadd.f32 %v657, %v635
        %v659 = vadd.f32 %v658, %v636
        %v660 = vadd.f32 %v659, %v637
        %v661 = vadd.f32 %v660, %v638
        %v662 = vadd.f32 %v661, %v639
        %v663 = vadd.f32 %v662, %v640
        %v664 = vadd.f32 %v663, %v641
        %v665 = vrot.slane %v664, 4
        %v666 = vadd.f32 %v664, %v665
        %v667 = vrot.slane %v666, 2
        %v668 = vadd.f32 %v666, %v667
        %v669 = vrot.slane %v668, 1
        %v670 = vadd.f32 %v668, %v669
        %671 = vst [vmem:[%s311] sm:$0x1] %v670
        %s672 = sand.u32 %s76, 1
        %s673 = scalar_lea.sflag [#allocation4], %s672
        %s674 = sand.u32 %s76, 1
        %s675 = scalar_lea.vmem [#allocation3], %s674
        %s676 = sand.u32 %s102, 1
        %s677 = scalar_lea.sflag [#allocation6], %s676
        %s678 = sand.u32 %s102, 1
        %s679 = scalar_lea.vmem [#allocation5], %s678
        // Predicated region
        $region70: #{tpu_custom_call.1} parent=64 // pred_check
          %p680 = pneg %p86
        $region71: #{tpu_custom_call.1} parent=64 // pred_check_branch
          %682 = sbr.rel (%p680) target = $region73
        $region72: #{tpu_custom_call.1} parent=64 // pred_region
          %s684 = ssub.s32 16, 16
          %685 = vsyncadd %s673, %s684
          %s686 = smul.addr %s21, 16
          %s687 = scalar_lea.hbm %s2, %s686
          %s689 = sshll.u32 %s675, 4
          %s690 = int_to_ptr.vmem [resolvable:$true] %s689
          %692 = dma.vmem_to_hbm [thread:$0]  %s690, 16, %s687, %s673
        $region73: #{tpu_custom_call.1} parent=64 // pred_fallthru
          _
        // Predicated region
        $region74: #{tpu_custom_call.1} parent=64 // pred_check
          %p693 = pneg %p112
        $region75: #{tpu_custom_call.1} parent=64 // pred_check_branch
          %695 = sbr.rel (%p693) target = $region77
        $region76: #{tpu_custom_call.1} parent=64 // pred_region
          %s697 = ssub.s32 16, 16
          %698 = vsyncadd %s677, %s697
          %s699 = smul.addr %s21, 16
          %s700 = scalar_lea.hbm %s3, %s699
          %s702 = sshll.u32 %s679, 4
          %s703 = int_to_ptr.vmem [resolvable:$true] %s702
          %705 = dma.vmem_to_hbm [thread:$0]  %s703, 16, %s700, %s677
        $region77: #{tpu_custom_call.1} parent=64 // pred_fallthru
          _
      $region65: #{tpu_custom_call.1} parent=5 // pred_fallthru
        _
      %p706 = scmp.le.s32.totalorder 2, %s16
      // Predicated region
      $region78: #{tpu_custom_call.1} parent=5 // pred_check
        %p707 = pneg %p706
      $region79: #{tpu_custom_call.1} parent=5 // pred_check_branch
        %709 = sbr.rel (%p707) target = $region81
      $region80: #{tpu_custom_call.1} parent=5 // pred_region
        %s710 = ssub.s32 %s16, 2
        // Predicated region
        $region82: #{tpu_custom_call.1} parent=80 // pred_check
          %p711 = pneg %p92
        $region83: #{tpu_custom_call.1} parent=80 // pred_check_branch
          %713 = sbr.rel (%p711) target = $region85
        $region84: #{tpu_custom_call.1} parent=80 // pred_region
          %s714 = sand.u32 %s77, 1
          %s715 = scalar_lea.sflag [#allocation4], %s714
          %s716 = sand.u32 %s77, 1
          %s717 = scalar_lea.vmem [#allocation3], %s716
          %718 = dma.done %s715, 16
        $region85: #{tpu_custom_call.1} parent=80 // pred_fallthru
          _
        // Predicated region
        $region86: #{tpu_custom_call.1} parent=80 // pred_check
          %p719 = pneg %p118
        $region87: #{tpu_custom_call.1} parent=80 // pred_check_branch
          %721 = sbr.rel (%p719) target = $region89
        $region88: #{tpu_custom_call.1} parent=80 // pred_region
          %s722 = sand.u32 %s103, 1
          %s723 = scalar_lea.sflag [#allocation6], %s722
          %s724 = sand.u32 %s103, 1
          %s725 = scalar_lea.vmem [#allocation5], %s724
          %726 = dma.done %s723, 16
        $region89: #{tpu_custom_call.1} parent=80 // pred_fallthru
          _
      $region81: #{tpu_custom_call.1} parent=5 // pred_fallthru
        _
    $region6: #{tpu_custom_call.1} parent=1 // loop_footer
      %s20 = sadd.s32 1, %s16
    $region7: #{tpu_custom_call.1} parent=1 // loop_footer_branch
      %15 = sbr.rel target = $region3
    $region8: #{tpu_custom_call.1} parent=1 // loop_exit
      _
    %727 = vsyncpa [#allocation4], 1
    %s728 = scalar_lea.sflag [#allocation4], 1
    %729 = vsyncpa %s728, 1
    %730 = vsyncpa [#allocation6], 1
    %s731 = scalar_lea.sflag [#allocation6], 1
    %732 = vsyncpa %s731, 1

</llo_original>
